<compile_context>
chip_gen: v6e
topology: v6e:2x2x1
jax: 0.10.0
libtpu: 0.0.40
codegen_flags: <defaults>
</compile_context>

<pallas_src>
import functools

import jax
import jax.numpy as jnp
from jax import lax
from jax.experimental import pallas as pl
from jax.experimental.pallas import tpu as pltpu


# ----------------------------- Pallas kernel --------------------------------
def _sepconv_kernel(x_ref, y_ref, dww_ref, pw_ref, bias_ref, o_ref, pad_ref,
                    *, H, W, C, stride, ro):
    # x_ref  : (1, H//2, W, C) bf16  coarse map, columns already 2x interleaved
    # y_ref  : (1, H, W, C)    bf16  fine map
    # dww_ref: (9, C) f32            depthwise 3x3 taps (row-major ky*3+kx)
    # pw_ref : (C, C) bf16           pointwise weights with BN scale folded in
    # bias_ref: (1, C) f32           folded BN / conv biases
    # o_ref  : (1, Ho, Wo, C) bf16   Ho = H//stride, Wo = W//stride
    # pad_ref: (H+2, W+2, C) f32     zero-padded upsample_add sum (VMEM scratch)
    Ho, Wo = H // stride, W // stride

    # --- zero only the 1-pixel halo; the interior is fully overwritten below ---
    zrow = jnp.zeros((1, W + 2, C), jnp.float32)
    pad_ref[0:1, :, :] = zrow
    pad_ref[H + 1:H + 2, :, :] = zrow
    zcol = jnp.zeros((H + 2, 1, C), jnp.float32)
    pad_ref[:, 0:1, :] = zcol
    pad_ref[:, W + 1:W + 2, :] = zcol

    # --- fused nearest-2x upsample (row duplication) + add, all in VMEM ---
    xh = x_ref[0].astype(jnp.float32)                              # (H//2, W, C)
    x_up = jnp.concatenate([xh[:, None], xh[:, None]], axis=1).reshape(H, W, C)
    pad_ref[1:H + 1, 1:W + 1, :] = x_up + y_ref[0].astype(jnp.float32)

    dww = dww_ref[...]                                             # (9, C)  f32
    pw = pw_ref[...]                                               # (C, C)  bf16
    bias = bias_ref[...]                                           # (1, C)  f32

    # --- chunked depthwise 3x3 -> pointwise matmul -> bias -> ReLU ---
    Wc = W if stride == 1 else Wo
    for c in range(Ho // ro):
        r0 = c * ro                                    # output-row offset
        acc = None
        for k in range(9):
            dy, dx = divmod(k, 3)
            if stride == 1:
                win = pad_ref[r0 + dy:r0 + dy + ro, dx:dx + W, :]
            else:
                # stride 2: even output columns via a stride-2 sublane read,
                # even output rows via a contiguous read + free major reshape.
                win = pad_ref[2 * r0 + dy:2 * r0 + dy + 2 * ro,
                              pl.ds(dx, Wo, 2), :]
                win = win.reshape(ro, 2, Wo, C)[:, 0]
            # TODO(synk): the dx = +/-1 taps could use pltpu.roll on the sublane
            # axis to offload the shift to the XLU instead of unaligned reads.
            t = win * dww[k].reshape(1, 1, C)
            acc = t if acc is None else acc + t

        flat = acc.reshape(ro * Wc, C).astype(jnp.bfloat16)
        z = jnp.dot(flat, pw, preferred_element_type=jnp.float32)  # MXU
        z = jnp.maximum(z + bias, 0.0)                             # bias + ReLU
        o_ref[:, r0:r0 + ro, :, :] = z.reshape(1, ro, Wc, C).astype(o_ref.dtype)


def _pick_chunk_rows(Ho, Wc, C):
    """Output rows per chunk: an exact divisor of Ho (static loop, no remainder),
    targeting a per-chunk matmul M = ro*Wc of >= ~512 rows while keeping the
    f32 accumulator around <= ~512 KiB so it stays near the vreg file instead
    of spilling a whole-image tensor to VMEM."""
    max_elems = max(Wc, (512 * 1024) // (C * 4))
    ro = 1
    for cand in range(1, Ho + 1):
        if Ho % cand == 0 and cand * Wc <= max_elems:
            ro = cand
            if cand * Wc >= 512:
                break
    return ro


def sepconv_pallas(x_lo, y, p, stride):
    """SeparableConv2d(upsample_add(x_lo, y)); x_lo is the coarse (half-res) map."""
    N, H, W, C = y.shape
    Nx, Hx, Wx, Cx = x_lo.shape
    assert (Nx, Cx) == (N, C) and H == 2 * Hx and W == 2 * Wx
    assert H % stride == 0 and W % stride == 0
    Ho, Wo = H // stride, W // stride

    # Nearest-2x COLUMN interleave done here at half resolution (the HBM
    # intermediate is Hx*W, a quarter of the old full-res upsampled map); the
    # row duplication happens inside the kernel.
    # TODO(synk): move this sublane interleave in-kernel too (strided store or
    # sublane-merge reshape) to drop the last XLA intermediate entirely.
    x_wi = jnp.repeat(x_lo, 2, axis=2)                     # (N, Hx, W, C) bf16

    ro = _pick_chunk_rows(Ho, Wo if stride == 2 else W, C)
    kernel = functools.partial(_sepconv_kernel, H=H, W=W, C=C,
                               stride=stride, ro=ro)

    # Per-step VMEM: pad scratch (f32) + double-buffered bf16 I/O + weights.
    # ~44 MiB at the production 160x160x128 level -> fits v7x's 64 MiB VMEM;
    # v5e/v6e (128 MiB) have ample headroom.
    # TODO(synk): an output-row-tile grid axis (halo via manual DMA /
    # emit_pipeline) would make the footprint shape-independent and let v7x's
    # two TensorCores split one image when N == 1.
    vmem_need = ((H + 2) * (W + 2) * C * 4
                 + 2 * (Hx * W + H * W + Ho * Wo) * C * 2
                 + 4 * C * C * 2)
    vmem_limit = max(16 << 20, int(1.25 * vmem_need) + (2 << 20))

    return pl.pallas_call(
        kernel,
        out_shape=jax.ShapeDtypeStruct((N, Ho, Wo, C), jnp.bfloat16),
        grid=(N,),
        in_specs=[
            pl.BlockSpec((1, Hx, W, C), lambda n: (n, 0, 0, 0)),   # x (coarse rows)
            pl.BlockSpec((1, H, W, C), lambda n: (n, 0, 0, 0)),    # y
            pl.BlockSpec((9, C), lambda n: (0, 0)),                # depthwise taps
            pl.BlockSpec((C, C), lambda n: (0, 0)),                # pointwise (BN folded)
            pl.BlockSpec((1, C), lambda n: (0, 0)),                # bias
        ],
        out_specs=pl.BlockSpec((1, Ho, Wo, C), lambda n: (n, 0, 0, 0)),
        scratch_shapes=[pltpu.VMEM((H + 2, W + 2, C), jnp.float32)],
        compiler_params=pltpu.CompilerParams(
            dimension_semantics=("parallel",),         # batch across 2 TCs on v7x
            vmem_limit_bytes=vmem_limit),
    )(x_wi, y, p['dw_w'], p['pw_eff_bf16'], p['bias'])


# ----------------------------- JAX reference ---------------------------------
def sepconv_ref(x_lo, y, p, stride):
    """Pure-JAX f32 reference (lax conv) with the same bf16 layer I/O contract."""
    C = y.shape[-1]
    x_up = jnp.repeat(jnp.repeat(x_lo, 2, axis=1), 2, axis=2)
    s = x_up.astype(jnp.float32) + y.astype(jnp.float32)
    dw = lax.conv_general_dilated(
        s, p['dw_w'].reshape(3, 3, 1, C), window_strides=(stride, stride),
        padding=((1, 1), (1, 1)), dimension_numbers=('NHWC', 'HWIO', 'NHWC'),
        feature_group_count=C)
    z = jnp.einsum('nhwc,cd->nhwd', dw, p['pw_eff']) + p['bias'].reshape(1, 1, 1, C)
    return jnp.maximum(z, 0.0).astype(jnp.bfloat16)


# ----------------------------- forward glue ----------------------------------
def fpem_forward(c2, c3, c4, c5, params, conv_fn):
    # wrapper I/O is NCHW f32 (PyTorch); internally NHWC bf16 feature maps
    # (C on the 128-lane axis; bf16 halves HBM traffic between layers).
    to_nhwc = lambda t: jnp.transpose(t, (0, 2, 3, 1)).astype(jnp.bfloat16)
    to_nchw = lambda t: jnp.transpose(t.astype(jnp.float32), (0, 3, 1, 2))
    c2, c3, c4, c5 = map(to_nhwc, (c2, c3, c4, c5))

    c4 = conv_fn(c5, c4, params['up1'], 1)
    c3 = conv_fn(c4, c3, params['up2'], 1)
    c2 = conv_fn(c3, c2, params['up3'], 1)
    c3 = conv_fn(c3, c2, params['down1'], 2)
    c4 = conv_fn(c4, c3, params['down2'], 2)
    c5 = conv_fn(c5, c4, params['down3'], 2)
    # TODO(synk): the coarsest levels are launch/grid-overhead dominated; fusing
    # them into one pallas_call with the maps resident in VMEM (or folding batch
    # into the matmul M) would remove ~10 HBM round trips of tiny intermediates.
    return tuple(map(to_nchw, (c2, c3, c4, c5)))


def init_sepconv_params(key, C):
    k = jax.random.split(key, 8)
    dw_w = jax.random.normal(k[0], (3, 3, C), jnp.float32) * 0.2
    dw_b = jax.random.normal(k[1], (C,), jnp.float32) * 0.1
    pw_w = jax.random.normal(k[2], (C, C), jnp.float32) * (1.0 / C ** 0.5)
    pw_b = jax.random.normal(k[3], (C,), jnp.float32) * 0.1
    gamma = 1.0 + 0.1 * jax.random.normal(k[4], (C,), jnp.float32)
    beta = 0.1 * jax.random.normal(k[5], (C,), jnp.float32)
    mean = 0.1 * jax.random.normal(k[6], (C,), jnp.float32)
    var = jax.random.uniform(k[7], (C,), jnp.float32, minval=0.5, maxval=1.5)
    # Inference BatchNorm + both conv biases folded on the host:
    #   ((dw(s) + dw_b) @ Wp + pw_b - mean) * scale + beta
    #     = dw(s) @ (Wp*scale) + [dw_b @ (Wp*scale) + (pw_b - mean)*scale + beta]
    # The scale is folded into the pointwise weights in f32 BEFORE the bf16
    # cast so no extra quantisation error is introduced.
    scale = gamma / jnp.sqrt(var + 1e-5)
    pw_eff = pw_w * scale[None, :]
    bias = dw_b @ pw_eff + (pw_b - mean) * scale + beta
    return dict(dw_w=dw_w.reshape(9, C),
                pw_eff=pw_eff,                              # f32 (reference path)
                pw_eff_bf16=pw_eff.astype(jnp.bfloat16),    # kernel MXU path
                bias=bias.reshape(1, C))


if __name__ == "__main__":
    key = jax.random.PRNGKey(0)
    kx, kp = jax.random.split(key)
    N, C = 2, 128                    # C = 128 matches the FPEM default
    ks = jax.random.split(kx, 4)
    c2 = jax.random.normal(ks[0], (N, C, 16, 16), jnp.float32)
    c3 = jax.random.normal(ks[1], (N, C, 8, 8), jnp.float32)
    c4 = jax.random.normal(ks[2], (N, C, 4, 4), jnp.float32)
    c5 = jax.random.normal(ks[3], (N, C, 2, 2), jnp.float32)

    names = ['up1', 'up2', 'up3', 'down1', 'down2', 'down3']
    params = {n: init_sepconv_params(k, C)
              for n, k in zip(names, jax.random.split(kp, 6))}

    outs = jax.block_until_ready(
        fpem_forward(c2, c3, c4, c5, params, sepconv_pallas))
    refs = fpem_forward(c2, c3, c4, c5, params, sepconv_ref)

    expected = [(N, C, 16, 16), (N, C, 8, 8), (N, C, 4, 4), (N, C, 2, 2)]
    for o, r, es in zip(outs, refs, expected):
        assert o.shape == es, (o.shape, es)
        err = float(jnp.max(jnp.abs(o - r)))
        # bf16 pointwise matmuls (f32 accumulation) cascaded up to 6 layers deep
        # vs the f32 lax reference -> loose tolerance
        assert jnp.allclose(o, r, atol=1e-1, rtol=1e-1), err
    print("KERNEL_OK")
</pallas_src>

<mosaic_0001>
module attributes {stable_mosaic.version = 11 : i64} {
  func.func @_sepconv_kernel(%arg0: i32, %arg1: memref<1x2x4x128xbf16, #tpu.memory_space<vmem>>, %arg2: memref<1x4x4x128xbf16, #tpu.memory_space<vmem>>, %arg3: memref<9x128xf32, #tpu.memory_space<vmem>>, %arg4: memref<128x128xbf16, #tpu.memory_space<vmem>>, %arg5: memref<1x128xf32, #tpu.memory_space<vmem>>, %arg6: memref<1x4x4x128xbf16, #tpu.memory_space<vmem>>, %arg7: memref<6x6x128xf32, #tpu.memory_space<vmem>>) attributes {dimension_semantics = [#tpu.dimension_semantics<parallel>], iteration_bounds = array<i64: 2>, scalar_prefetch = 0 : i64, scratch_operands = 1 : i64, tpu.core_type = #tpu.core_type<tc>, window_params = [{transform_indices = @transform_0, window_bounds = array<i64: 1, 2, 4, 128>}, {transform_indices = @transform_1, window_bounds = array<i64: 1, 4, 4, 128>}, {pipeline_mode = #tpu.pipeline_mode<synchronous>, transform_indices = @transform_2, window_bounds = array<i64: 9, 128>}, {pipeline_mode = #tpu.pipeline_mode<synchronous>, transform_indices = @transform_3, window_bounds = array<i64: 128, 128>}, {pipeline_mode = #tpu.pipeline_mode<synchronous>, transform_indices = @transform_4, window_bounds = array<i64: 1, 128>}, {transform_indices = @transform_5, window_bounds = array<i64: 1, 4, 4, 128>}]} {
    %cst = arith.constant 0.000000e+00 : f32
    %0 = vector.broadcast %cst : f32 to vector<1x6x128xf32>
    %c0 = arith.constant 0 : index
    %c0_0 = arith.constant 0 : index
    %c0_1 = arith.constant 0 : index
    %1 = vector.load %arg7[%c0, %c0_0, %c0_1] : memref<6x6x128xf32, #tpu.memory_space<vmem>>, vector<1x6x128xf32>
    tpu.vector_store %arg7[%c0, %c0_0, %c0_1], %0 {strides = array<i32>} : memref<6x6x128xf32, #tpu.memory_space<vmem>>, vector<1x6x128xf32>,
    %c5 = arith.constant 5 : index
    %c0_2 = arith.constant 0 : index
    %c0_3 = arith.constant 0 : index
    %2 = vector.load %arg7[%c5, %c0_2, %c0_3] : memref<6x6x128xf32, #tpu.memory_space<vmem>>, vector<1x6x128xf32>
    tpu.vector_store %arg7[%c5, %c0_2, %c0_3], %0 {strides = array<i32>} : memref<6x6x128xf32, #tpu.memory_space<vmem>>, vector<1x6x128xf32>,
    %cst_4 = arith.constant 0.000000e+00 : f32
    %3 = vector.broadcast %cst_4 : f32 to vector<6x1x128xf32>
    %c0_5 = arith.constant 0 : index
    %c0_6 = arith.constant 0 : index
    %c0_7 = arith.constant 0 : index
    %4 = vector.load %arg7[%c0_5, %c0_6, %c0_7] : memref<6x6x128xf32, #tpu.memory_space<vmem>>, vector<6x1x128xf32>
    tpu.vector_store %arg7[%c0_5, %c0_6, %c0_7], %3 {strides = array<i32>} : memref<6x6x128xf32, #tpu.memory_space<vmem>>, vector<6x1x128xf32>,
    %c0_8 = arith.constant 0 : index
    %c5_9 = arith.constant 5 : index
    %c0_10 = arith.constant 0 : index
    %5 = vector.load %arg7[%c0_8, %c5_9, %c0_10] : memref<6x6x128xf32, #tpu.memory_space<vmem>>, vector<6x1x128xf32>
    tpu.vector_store %arg7[%c0_8, %c5_9, %c0_10], %3 {strides = array<i32>} : memref<6x6x128xf32, #tpu.memory_space<vmem>>, vector<6x1x128xf32>,
    %c0_11 = arith.constant 0 : index
    %c0_12 = arith.constant 0 : index
    %c0_13 = arith.constant 0 : index
    %c0_14 = arith.constant 0 : index
    %6 = vector.load %arg1[%c0_11, %c0_12, %c0_13, %c0_14] : memref<1x2x4x128xbf16, #tpu.memory_space<vmem>>, vector<1x2x4x128xbf16>
    %7 = vector.shape_cast %6 : vector<1x2x4x128xbf16> to vector<2x4x128xbf16>
    %8 = arith.extf %7 : vector<2x4x128xbf16> to vector<2x4x128xf32>
    %9 = vector.shape_cast %8 : vector<2x4x128xf32> to vector<2x1x4x128xf32>
    %10 = vector.shape_cast %8 : vector<2x4x128xf32> to vector<2x1x4x128xf32>
    %11 = tpu.concatenate %9, %10 in 1 : vector<2x1x4x128xf32>, vector<2x1x4x128xf32> -> vector<2x2x4x128xf32>
    %12 = vector.shape_cast %11 : vector<2x2x4x128xf32> to vector<4x4x128xf32>
    %c0_15 = arith.constant 0 : index
    %c0_16 = arith.constant 0 : index
    %c0_17 = arith.constant 0 : index
    %c0_18 = arith.constant 0 : index
    %13 = vector.load %arg2[%c0_15, %c0_16, %c0_17, %c0_18] : memref<1x4x4x128xbf16, #tpu.memory_space<vmem>>, vector<1x4x4x128xbf16>
    %14 = vector.shape_cast %13 : vector<1x4x4x128xbf16> to vector<4x4x128xbf16>
    %15 = arith.extf %14 : vector<4x4x128xbf16> to vector<4x4x128xf32>
    %16 = arith.addf %12, %15 : vector<4x4x128xf32>
    %c1 = arith.constant 1 : index
    %c1_19 = arith.constant 1 : index
    %c0_20 = arith.constant 0 : index
    %17 = vector.load %arg7[%c1, %c1_19, %c0_20] : memref<6x6x128xf32, #tpu.memory_space<vmem>>, vector<4x4x128xf32>
    tpu.vector_store %arg7[%c1, %c1_19, %c0_20], %16 {strides = array<i32>} : memref<6x6x128xf32, #tpu.memory_space<vmem>>, vector<4x4x128xf32>,
    %c0_21 = arith.constant 0 : index
    %c0_22 = arith.constant 0 : index
    %18 = vector.load %arg3[%c0_21, %c0_22] : memref<9x128xf32, #tpu.memory_space<vmem>>, vector<9x128xf32>
    %c0_23 = arith.constant 0 : index
    %c0_24 = arith.constant 0 : index
    %19 = vector.load %arg4[%c0_23, %c0_24] : memref<128x128xbf16, #tpu.memory_space<vmem>>, vector<128x128xbf16>
    %c0_25 = arith.constant 0 : index
    %c0_26 = arith.constant 0 : index
    %20 = vector.load %arg5[%c0_25, %c0_26] : memref<1x128xf32, #tpu.memory_space<vmem>>, vector<1x128xf32>
    %c0_27 = arith.constant 0 : index
    %c0_28 = arith.constant 0 : index
    %c0_29 = arith.constant 0 : index
    %21 = vector.load %arg7[%c0_27, %c0_28, %c0_29] : memref<6x6x128xf32, #tpu.memory_space<vmem>>, vector<4x4x128xf32>
    %22 = vector.extract_strided_slice %18 {offsets = [0, 0], sizes = [1, 128], strides = [1, 1]} : vector<9x128xf32> to vector<1x128xf32>
    %23 = vector.shape_cast %22 : vector<1x128xf32> to vector<128xf32>
    %24 = vector.shape_cast %23 : vector<128xf32> to vector<1x1x128xf32>
    %25 = vector.broadcast %24 : vector<1x1x128xf32> to vector<4x4x128xf32>
    %26 = arith.mulf %21, %25 : vector<4x4x128xf32>
    %c0_30 = arith.constant 0 : index
    %c1_31 = arith.constant 1 : index
    %c0_32 = arith.constant 0 : index
    %27 = vector.load %arg7[%c0_30, %c1_31, %c0_32] : memref<6x6x128xf32, #tpu.memory_space<vmem>>, vector<4x4x128xf32>
    %28 = vector.extract_strided_slice %18 {offsets = [1, 0], sizes = [1, 128], strides = [1, 1]} : vector<9x128xf32> to vector<1x128xf32>
    %29 = vector.shape_cast %28 : vector<1x128xf32> to vector<128xf32>
    %30 = vector.shape_cast %29 : vector<128xf32> to vector<1x1x128xf32>
    %31 = vector.broadcast %30 : vector<1x1x128xf32> to vector<4x4x128xf32>
    %32 = arith.mulf %27, %31 : vector<4x4x128xf32>
    %33 = arith.addf %26, %32 : vector<4x4x128xf32>
    %c0_33 = arith.constant 0 : index
    %c2 = arith.constant 2 : index
    %c0_34 = arith.constant 0 : index
    %34 = vector.load %arg7[%c0_33, %c2, %c0_34] : memref<6x6x128xf32, #tpu.memory_space<vmem>>, vector<4x4x128xf32>
    %35 = vector.extract_strided_slice %18 {offsets = [2, 0], sizes = [1, 128], strides = [1, 1]} : vector<9x128xf32> to vector<1x128xf32>
    %36 = vector.shape_cast %35 : vector<1x128xf32> to vector<128xf32>
    %37 = vector.shape_cast %36 : vector<128xf32> to vector<1x1x128xf32>
    %38 = vector.broadcast %37 : vector<1x1x128xf32> to vector<4x4x128xf32>
    %39 = arith.mulf %34, %38 : vector<4x4x128xf32>
    %40 = arith.addf %33, %39 : vector<4x4x128xf32>
    %c1_35 = arith.constant 1 : index
    %c0_36 = arith.constant 0 : index
    %c0_37 = arith.constant 0 : index
    %41 = vector.load %arg7[%c1_35, %c0_36, %c0_37] : memref<6x6x128xf32, #tpu.memory_space<vmem>>, vector<4x4x128xf32>
    %42 = vector.extract_strided_slice %18 {offsets = [3, 0], sizes = [1, 128], strides = [1, 1]} : vector<9x128xf32> to vector<1x128xf32>
    %43 = vector.shape_cast %42 : vector<1x128xf32> to vector<128xf32>
    %44 = vector.shape_cast %43 : vector<128xf32> to vector<1x1x128xf32>
    %45 = vector.broadcast %44 : vector<1x1x128xf32> to vector<4x4x128xf32>
    %46 = arith.mulf %41, %45 : vector<4x4x128xf32>
    %47 = arith.addf %40, %46 : vector<4x4x128xf32>
    %c1_38 = arith.constant 1 : index
    %c1_39 = arith.constant 1 : index
    %c0_40 = arith.constant 0 : index
    %48 = vector.load %arg7[%c1_38, %c1_39, %c0_40] : memref<6x6x128xf32, #tpu.memory_space<vmem>>, vector<4x4x128xf32>
    %49 = vector.extract_strided_slice %18 {offsets = [4, 0], sizes = [1, 128], strides = [1, 1]} : vector<9x128xf32> to vector<1x128xf32>
    %50 = vector.shape_cast %49 : vector<1x128xf32> to vector<128xf32>
    %51 = vector.shape_cast %50 : vector<128xf32> to vector<1x1x128xf32>
    %52 = vector.broadcast %51 : vector<1x1x128xf32> to vector<4x4x128xf32>
    %53 = arith.mulf %48, %52 : vector<4x4x128xf32>
    %54 = arith.addf %47, %53 : vector<4x4x128xf32>
    %c1_41 = arith.constant 1 : index
    %c2_42 = arith.constant 2 : index
    %c0_43 = arith.constant 0 : index
    %55 = vector.load %arg7[%c1_41, %c2_42, %c0_43] : memref<6x6x128xf32, #tpu.memory_space<vmem>>, vector<4x4x128xf32>
    %56 = vector.extract_strided_slice %18 {offsets = [5, 0], sizes = [1, 128], strides = [1, 1]} : vector<9x128xf32> to vector<1x128xf32>
    %57 = vector.shape_cast %56 : vector<1x128xf32> to vector<128xf32>
    %58 = vector.shape_cast %57 : vector<128xf32> to vector<1x1x128xf32>
    %59 = vector.broadcast %58 : vector<1x1x128xf32> to vector<4x4x128xf32>
    %60 = arith.mulf %55, %59 : vector<4x4x128xf32>
    %61 = arith.addf %54, %60 : vector<4x4x128xf32>
    %c2_44 = arith.constant 2 : index
    %c0_45 = arith.constant 0 : index
    %c0_46 = arith.constant 0 : index
    %62 = vector.load %arg7[%c2_44, %c0_45, %c0_46] : memref<6x6x128xf32, #tpu.memory_space<vmem>>, vector<4x4x128xf32>
    %63 = vector.extract_strided_slice %18 {offsets = [6, 0], sizes = [1, 128], strides = [1, 1]} : vector<9x128xf32> to vector<1x128xf32>
    %64 = vector.shape_cast %63 : vector<1x128xf32> to vector<128xf32>
    %65 = vector.shape_cast %64 : vector<128xf32> to vector<1x1x128xf32>
    %66 = vector.broadcast %65 : vector<1x1x128xf32> to vector<4x4x128xf32>
    %67 = arith.mulf %62, %66 : vector<4x4x128xf32>
    %68 = arith.addf %61, %67 : vector<4x4x128xf32>
    %c2_47 = arith.constant 2 : index
    %c1_48 = arith.constant 1 : index
    %c0_49 = arith.constant 0 : index
    %69 = vector.load %arg7[%c2_47, %c1_48, %c0_49] : memref<6x6x128xf32, #tpu.memory_space<vmem>>, vector<4x4x128xf32>
    %70 = vector.extract_strided_slice %18 {offsets = [7, 0], sizes = [1, 128], strides = [1, 1]} : vector<9x128xf32> to vector<1x128xf32>
    %71 = vector.shape_cast %70 : vector<1x128xf32> to vector<128xf32>
    %72 = vector.shape_cast %71 : vector<128xf32> to vector<1x1x128xf32>
    %73 = vector.broadcast %72 : vector<1x1x128xf32> to vector<4x4x128xf32>
    %74 = arith.mulf %69, %73 : vector<4x4x128xf32>
    %75 = arith.addf %68, %74 : vector<4x4x128xf32>
    %c2_50 = arith.constant 2 : index
    %c2_51 = arith.constant 2 : index
    %c0_52 = arith.constant 0 : index
    %76 = vector.load %arg7[%c2_50, %c2_51, %c0_52] : memref<6x6x128xf32, #tpu.memory_space<vmem>>, vector<4x4x128xf32>
    %77 = vector.extract_strided_slice %18 {offsets = [8, 0], sizes = [1, 128], strides = [1, 1]} : vector<9x128xf32> to vector<1x128xf32>
    %78 = vector.shape_cast %77 : vector<1x128xf32> to vector<128xf32>
    %79 = vector.shape_cast %78 : vector<128xf32> to vector<1x1x128xf32>
    %80 = vector.broadcast %79 : vector<1x1x128xf32> to vector<4x4x128xf32>
    %81 = arith.mulf %76, %80 : vector<4x4x128xf32>
    %82 = arith.addf %75, %81 : vector<4x4x128xf32>
    %83 = vector.shape_cast %82 : vector<4x4x128xf32> to vector<16x128xf32>
    %84 = arith.truncf %83 : vector<16x128xf32> to vector<16x128xbf16>
    %cst_53 = arith.constant dense<0.000000e+00> : vector<16x128xf32>
    %85 = tpu.matmul %84, %19, %cst_53 {dimension_numbers = #tpu.dot_dimension_numbers<[1], [0], [0], [1], [0, 0, 1, 1], [], []>} : vector<16x128xbf16>, vector<128x128xbf16>, vector<16x128xf32> -> vector<16x128xf32>
    %86 = vector.broadcast %20 : vector<1x128xf32> to vector<16x128xf32>
    %87 = arith.addf %85, %86 : vector<16x128xf32>
    %cst_54 = arith.constant 0.000000e+00 : f32
    %88 = vector.broadcast %cst_54 : f32 to vector<16x128xf32>
    %89 = arith.maximumf %87, %88 : vector<16x128xf32>
    %90 = vector.shape_cast %89 : vector<16x128xf32> to vector<1x4x4x128xf32>
    %91 = arith.truncf %90 : vector<1x4x4x128xf32> to vector<1x4x4x128xbf16>
    %c0_55 = arith.constant 0 : index
    %c0_56 = arith.constant 0 : index
    %c0_57 = arith.constant 0 : index
    %c0_58 = arith.constant 0 : index
    %92 = vector.load %arg6[%c0_55, %c0_56, %c0_57, %c0_58] : memref<1x4x4x128xbf16, #tpu.memory_space<vmem>>, vector<1x4x4x128xbf16>
    tpu.vector_store %arg6[%c0_55, %c0_56, %c0_57, %c0_58], %91 {strides = array<i32>} : memref<1x4x4x128xbf16, #tpu.memory_space<vmem>>, vector<1x4x4x128xbf16>,
    return
  }
  func.func @transform_0(%arg0: i32) -> (i32, i32, i32, i32) {
    %c0_i32 = arith.constant 0 : i32
    %c0_i32_0 = arith.constant 0 : i32
    %c0_i32_1 = arith.constant 0 : i32
    %c0_i32_2 = arith.constant 0 : i32
    return %arg0, %c0_i32, %c0_i32_0, %c0_i32_1 : i32, i32, i32, i32
  }
  func.func @transform_1(%arg0: i32) -> (i32, i32, i32, i32) {
    %c0_i32 = arith.constant 0 : i32
    %c0_i32_0 = arith.constant 0 : i32
    %c0_i32_1 = arith.constant 0 : i32
    %c0_i32_2 = arith.constant 0 : i32
    return %arg0, %c0_i32, %c0_i32_0, %c0_i32_1 : i32, i32, i32, i32
  }
  func.func @transform_2(%arg0: i32) -> (i32, i32) {
    %c0_i32 = arith.constant 0 : i32
    %c0_i32_0 = arith.constant 0 : i32
    %c0_i32_1 = arith.constant 0 : i32
    return %c0_i32, %c0_i32_0 : i32, i32
  }
  func.func @transform_3(%arg0: i32) -> (i32, i32) {
    %c0_i32 = arith.constant 0 : i32
    %c0_i32_0 = arith.constant 0 : i32
    %c0_i32_1 = arith.constant 0 : i32
    return %c0_i32, %c0_i32_0 : i32, i32
  }
  func.func @transform_4(%arg0: i32) -> (i32, i32) {
    %c0_i32 = arith.constant 0 : i32
    %c0_i32_0 = arith.constant 0 : i32
    %c0_i32_1 = arith.constant 0 : i32
    return %c0_i32, %c0_i32_0 : i32, i32
  }
  func.func @transform_5(%arg0: i32) -> (i32, i32, i32, i32) {
    %c0_i32 = arith.constant 0 : i32
    %c0_i32_0 = arith.constant 0 : i32
    %c0_i32_1 = arith.constant 0 : i32
    %c0_i32_2 = arith.constant 0 : i32
    return %arg0, %c0_i32, %c0_i32_0, %c0_i32_1 : i32, i32, i32, i32
  }
}

</mosaic_0001>

<llo_original>
// kernel: tpu_custom_call.1
$region0: #{tpu_custom_call.1}
  #allocation0 [shape = 'u32[]', space=smem, size = 0x4, offset = 0x4, fixed_abs, tag = 'smem constant byte address 0x4 - core index']
  #allocation1 [shape = 'u32[144,128]{1,0:T(1,128)}', space=vmem, size = 0x12000, scoped, tag = 'internal scratch']
  #allocation2 [shape = 'f32[6,6,128]{2,1,0:T(8,128)}', space=vmem, size = 0x6000, scoped, tag = 'scratch operand']
  %s0 = inlined_call_operand.hbm [shape: bf16[2,2,4,128], index: 0, kind: input, shape index: {}]
  %s1 = inlined_call_operand.hbm [shape: bf16[2,4,4,128], index: 1, kind: input, shape index: {}]
  %s2 = inlined_call_operand.hbm [shape: f32[9,128], index: 2, kind: input, shape index: {}]
  %s3 = inlined_call_operand.hbm [shape: bf16[128,128], index: 3, kind: input, shape index: {}]
  %s4 = inlined_call_operand.vmem [shape: f32[1,128], index: 4, kind: input, shape index: {}]
  %s5 = inlined_call_operand.hbm [shape: bf16[2,4,4,128], index: 5, kind: output, shape index: {}]
  %s6 = sld [smem:[#allocation0]]
  $region69: #{tpu_custom_call.1} parent=0
    _
  %s8 = ssub.s32 1, %s6
  %s9 = scalar_select 0, %s8, %s6
  $region1: #{tpu_custom_call.1} parent=0
    #allocation3 [shape = 'u8[4096]{0}', space=vmem, size = 0x1000, scoped, tag = 'input window, operand 0']
    #allocation4 [shape = 's32[2]{0}', space=sflag, size = 0x8, scoped, tag = 'scoped memory for tpu_custom_call.1']
    #allocation5 [shape = 's32[2]{0}', space=sflag, size = 0x8, scoped, tag = 'scoped memory for tpu_custom_call.1']
    #allocation6 [shape = 'u8[8192]{0}', space=vmem, size = 0x2000, scoped, tag = 'input window, operand 1']
    #allocation7 [shape = 's32[2]{0}', space=sflag, size = 0x8, scoped, tag = 'scoped memory for tpu_custom_call.1']
    #allocation8 [shape = 'u8[8192]{0}', space=vmem, size = 0x2000, scoped, tag = 'input window, operand 2, single buffered']
    #allocation9 [shape = 'u8[32768]{0}', space=vmem, size = 0x8000, scoped, tag = 'input window, operand 3, single buffered']
    #allocation10 [shape = 's32[1]{0}', space=sflag, size = 0x4, scoped, tag = 'scoped memory for tpu_custom_call.1']
    #allocation11 [shape = 'u8[8192]{0}', space=vmem, size = 0x2000, scoped, tag = 'output window, operand 0']
    %10 = vsyncpa [#allocation4], 0
    %s11 = scalar_lea.sflag [#allocation4], 1
    %12 = vsyncpa %s11, 0
    %13 = vsyncpa [#allocation7], 0
    %s14 = scalar_lea.sflag [#allocation7], 1
    %15 = vsyncpa %s14, 0
    %16 = vsyncpa [#allocation10], 0
    %17 = vsyncpa [#allocation5], 0
    %s18 = scalar_lea.sflag [#allocation5], 1
    %19 = vsyncpa %s18, 0
    loop: start=0, step=1, limit=4
    $region2: #{tpu_custom_call.1} parent=1 // loop_pre_header
      _
    $region3: #{tpu_custom_call.1} parent=1 // loop_header
      %s21 = sphi 0, %s25
      %p22 = scmp.ge.s32.totalorder %s21, 4
      %s31 = sphi 0, %s33
      %s34 = sphi 0, %s31
      %s35 = sphi 0, %s34
      %s51 = sphi 0, %s35
      %s57 = sphi 0, %s59
      %s60 = sphi 0, %s57
      %s61 = sphi 0, %s60
      %s77 = sphi 0, %s61
      %s81 = sphi 0, %s81
      %s83 = sphi 0, %s81
      %s84 = sphi 0, %s83
      %s98 = sphi 0, %s84
      %s102 = sphi 0, %s102
      %s104 = sphi 0, %s102
      %s105 = sphi 0, %s104
      %s119 = sphi 0, %s105
      %s123 = sphi 0, %s123
      %s125 = sphi 0, %s123
      %s126 = sphi 0, %s125
      %s140 = sphi 0, %s126
      %s146 = sphi 0, %s148
      %s149 = sphi 0, %s146
      %s150 = sphi 0, %s149
      %s166 = sphi 0, %s150
    $region4: #{tpu_custom_call.1} parent=1 // loop_header_branch
      %24 = sbr.rel (%p22) target = $region8
    $region5: #{tpu_custom_call.1} parent=1 // loop_body
      %s26 = ssub.s32 %s21, 1
      %s27 = ssub.s32 %s21, 2
      %s28 = sadd.s32 %s21, 1
      %s29 = ssub.s32 %s21, %s28
      %p30 = scmp.eq.s32.totalorder %s29, 0
      %s32 = sadd.s32 %s31, 1
      %s33 = scalar_select %p30, %s31, %s32
      %p36 = pneg %p30
      %p37 = scmp.eq.s32.totalorder %s21, 1
      %p38 = por %p36, %p37
      %p39 = scmp.ne.s32.totalorder %s31, %s34
      %p40 = scmp.eq.s32.totalorder %s21, 0
      %p41 = por %p39, %p40
      %p42 = scmp.ne.s32.totalorder %s31, %s34
      %p43 = scmp.eq.s32.totalorder %s26, 1
      %p44 = por %p42, %p43
      %p45 = scmp.ne.s32.totalorder %s34, %s35
      %p46 = scmp.eq.s32.totalorder %s26, 0
      %p47 = por %p45, %p46
      %p48 = scmp.ne.s32.totalorder %s34, %s35
      %p49 = scmp.eq.s32.totalorder %s27, 1
      %p50 = por %p48, %p49
      %p52 = scmp.ne.s32.totalorder %s35, %s51
      %p53 = scmp.eq.s32.totalorder %s27, 0
      %p54 = por %p52, %p53
      %s55 = ssub.s32 %s21, %s28
      %p56 = scmp.eq.s32.totalorder %s55, 0
      %s58 = sadd.s32 %s57, 1
      %s59 = scalar_select %p56, %s57, %s58
      %p62 = pneg %p56
      %p63 = scmp.eq.s32.totalorder %s21, 1
      %p64 = por %p62, %p63
      %p65 = scmp.ne.s32.totalorder %s57, %s60
      %p66 = scmp.eq.s32.totalorder %s21, 0
      %p67 = por %p65, %p66
      %p68 = scmp.ne.s32.totalorder %s57, %s60
      %p69 = scmp.eq.s32.totalorder %s26, 1
      %p70 = por %p68, %p69
      %p71 = scmp.ne.s32.totalorder %s60, %s61
      %p72 = scmp.eq.s32.totalorder %s26, 0
      %p73 = por %p71, %p72
      %p74 = scmp.ne.s32.totalorder %s60, %s61
      %p75 = scmp.eq.s32.totalorder %s27, 1
      %p76 = por %p74, %p75
      %p78 = scmp.ne.s32.totalorder %s61, %s77
      %p79 = scmp.eq.s32.totalorder %s27, 0
      %p80 = por %p78, %p79
      %s82 = sadd.s32 %s81, 1
      %p85 = scmp.eq.s32.totalorder %s21, 1
      %p86 = scmp.ne.s32.totalorder %s81, %s83
      %p87 = scmp.eq.s32.totalorder %s21, 0
      %p88 = por %p86, %p87
      %p89 = scmp.ne.s32.totalorder %s81, %s83
      %p90 = scmp.eq.s32.totalorder %s26, 1
      %p91 = por %p89, %p90
      %p92 = scmp.ne.s32.totalorder %s83, %s84
      %p93 = scmp.eq.s32.totalorder %s26, 0
      %p94 = por %p92, %p93
      %p95 = scmp.ne.s32.totalorder %s83, %s84
      %p96 = scmp.eq.s32.totalorder %s27, 1
      %p97 = por %p95, %p96
      %p99 = scmp.ne.s32.totalorder %s84, %s98
      %p100 = scmp.eq.s32.totalorder %s27, 0
      %p101 = por %p99, %p100
      %s103 = sadd.s32 %s102, 1
      %p106 = scmp.eq.s32.totalorder %s21, 1
      %p107 = scmp.ne.s32.totalorder %s102, %s104
      %p108 = scmp.eq.s32.totalorder %s21, 0
      %p109 = por %p107, %p108
      %p110 = scmp.ne.s32.totalorder %s102, %s104
      %p111 = scmp.eq.s32.totalorder %s26, 1
      %p112 = por %p110, %p111
      %p113 = scmp.ne.s32.totalorder %s104, %s105
      %p114 = scmp.eq.s32.totalorder %s26, 0
      %p115 = por %p113, %p114
      %p116 = scmp.ne.s32.totalorder %s104, %s105
      %p117 = scmp.eq.s32.totalorder %s27, 1
      %p118 = por %p116, %p117
      %p120 = scmp.ne.s32.totalorder %s105, %s119
      %p121 = scmp.eq.s32.totalorder %s27, 0
      %p122 = por %p120, %p121
      %s124 = sadd.s32 %s123, 1
      %p127 = scmp.eq.s32.totalorder %s21, 1
      %p128 = scmp.ne.s32.totalorder %s123, %s125
      %p129 = scmp.eq.s32.totalorder %s21, 0
      %p130 = por %p128, %p129
      %p131 = scmp.ne.s32.totalorder %s123, %s125
      %p132 = scmp.eq.s32.totalorder %s26, 1
      %p133 = por %p131, %p132
      %p134 = scmp.ne.s32.totalorder %s125, %s126
      %p135 = scmp.eq.s32.totalorder %s26, 0
      %p136 = por %p134, %p135
      %p137 = scmp.ne.s32.totalorder %s125, %s126
      %p138 = scmp.eq.s32.totalorder %s27, 1
      %p139 = por %p137, %p138
      %p141 = scmp.ne.s32.totalorder %s126, %s140
      %p142 = scmp.eq.s32.totalorder %s27, 0
      %p143 = por %p141, %p142
      %s144 = ssub.s32 %s21, %s28
      %p145 = scmp.eq.s32.totalorder %s144, 0
      %s147 = sadd.s32 %s146, 1
      %s148 = scalar_select %p145, %s146, %s147
      %p151 = pneg %p145
      %p152 = scmp.eq.s32.totalorder %s21, 1
      %p153 = por %p151, %p152
      %p154 = scmp.ne.s32.totalorder %s146, %s149
      %p155 = scmp.eq.s32.totalorder %s21, 0
      %p156 = por %p154, %p155
      %p157 = scmp.ne.s32.totalorder %s146, %s149
      %p158 = scmp.eq.s32.totalorder %s26, 1
      %p159 = por %p157, %p158
      %p160 = scmp.ne.s32.totalorder %s149, %s150
      %p161 = scmp.eq.s32.totalorder %s26, 0
      %p162 = por %p160, %p161
      %p163 = scmp.ne.s32.totalorder %s149, %s150
      %p164 = scmp.eq.s32.totalorder %s27, 1
      %p165 = por %p163, %p164
      %p167 = scmp.ne.s32.totalorder %s150, %s166
      %p168 = scmp.eq.s32.totalorder %s27, 0
      %p169 = por %p167, %p168
      %p170 = scmp.le.s32.totalorder 1, %s21
      %p171 = scmp.lt.s32.totalorder %s21, 3
      %p172 = pnand %p170, %p171
      %p173 = pneg %p172
      // Predicated region
      $region9: #{tpu_custom_call.1} parent=5 // pred_check
        _
      $region10: #{tpu_custom_call.1} parent=5 // pred_check_branch
        %175 = sbr.rel (%p172) target = $region12
      $region11: #{tpu_custom_call.1} parent=5 // pred_region
        %s176 = ssub.s32 %s21, 1
        // Predicated region
        $region13: #{tpu_custom_call.1} parent=11 // pred_check
          %p177 = pneg %p94
        $region14: #{tpu_custom_call.1} parent=11 // pred_check_branch
          %179 = sbr.rel (%p177) target = $region16
        $region15: #{tpu_custom_call.1} parent=11 // pred_region
          %s181 = ssub.s32 256, 256
          %182 = vsyncadd [#allocation7], %s181
          %s183 = sshll.u32 [#allocation8], 4
          %s184 = int_to_ptr.vmem [resolvable:$true] %s183
          %189 = dma.hbm_to_vmem [thread:$0]  %s2, 256, %s184, [#allocation7], 128, 128, 8
        $region16: #{tpu_custom_call.1} parent=11 // pred_fallthru
          _
        // Predicated region
        $region17: #{tpu_custom_call.1} parent=11 // pred_check
          %p190 = pneg %p115
        $region18: #{tpu_custom_call.1} parent=11 // pred_check_branch
          %192 = sbr.rel (%p190) target = $region20
        $region19: #{tpu_custom_call.1} parent=11 // pred_region
          %s194 = ssub.s32 1024, 1024
          %195 = vsyncadd [#allocation10], %s194
          %s196 = sshll.u32 [#allocation9], 4
          %s197 = int_to_ptr.vmem [resolvable:$true] %s196
          %202 = dma.hbm_to_vmem [thread:$0]  %s3, 1024, %s197, [#allocation10], 64, 64, 4
        $region20: #{tpu_custom_call.1} parent=11 // pred_fallthru
          _
        // Predicated region
        $region21: #{tpu_custom_call.1} parent=11 // pred_check
          %p203 = pneg %p136
        $region22: #{tpu_custom_call.1} parent=11 // pred_check_branch
          %205 = sbr.rel (%p203) target = $region24
        $region23: #{tpu_custom_call.1} parent=11 // pred_region
          _
        $region24: #{tpu_custom_call.1} parent=11 // pred_fallthru
          _
      $region12: #{tpu_custom_call.1} parent=5 // pred_fallthru
        _
      %p206 = scmp.lt.s32.totalorder %s21, 2
      // Predicated region
      $region25: #{tpu_custom_call.1} parent=5 // pred_check
        %p207 = pneg %p206
      $region26: #{tpu_custom_call.1} parent=5 // pred_check_branch
        %209 = sbr.rel (%p207) target = $region28
      $region27: #{tpu_custom_call.1} parent=5 // pred_region
        // Predicated region
        $region29: #{tpu_custom_call.1} parent=27 // pred_check
          %p210 = pneg %p41
        $region30: #{tpu_custom_call.1} parent=27 // pred_check_branch
          %212 = sbr.rel (%p210) target = $region32
        $region31: #{tpu_custom_call.1} parent=27 // pred_region
          %s213 = sand.u32 %s31, 1
          %s214 = scalar_lea.sflag [#allocation4], %s213
          %s215 = sand.u32 %s31, 1
          %s216 = smul.addr %s215, 4
          %s217 = scalar_lea.vmem [#allocation3], %s216
          %s219 = ssub.s32 64, 64
          %220 = vsyncadd %s214, %s219
          %s221 = smul.addr %s21, 2
          %s222 = smul.addr %s221, 32
          %s223 = scalar_lea.hbm %s0, %s222
          %s224 = sshll.u32 %s217, 4
          %s225 = int_to_ptr.vmem [resolvable:$true] %s224
          %230 = dma.hbm_to_vmem [thread:$0]  %s223, 64, %s225, %s214, 32, 32, 2
        $region32: #{tpu_custom_call.1} parent=27 // pred_fallthru
          _
        // Predicated region
        $region33: #{tpu_custom_call.1} parent=27 // pred_check
          %p231 = pneg %p67
        $region34: #{tpu_custom_call.1} parent=27 // pred_check_branch
          %233 = sbr.rel (%p231) target = $region36
        $region35: #{tpu_custom_call.1} parent=27 // pred_region
          %s234 = sand.u32 %s21, 1
          %s235 = scalar_lea.sflag [#allocation7], %s234
          %s236 = sand.u32 %s57, 1
          %s237 = smul.addr %s236, 8
          %s238 = scalar_lea.vmem [#allocation6], %s237
          %s240 = ssub.s32 128, 128
          %241 = vsyncadd %s235, %s240
          %s242 = smul.addr %s21, 4
          %s243 = smul.addr %s242, 32
          %s244 = scalar_lea.hbm %s1, %s243
          %s245 = sshll.u32 %s238, 4
          %s246 = int_to_ptr.vmem [resolvable:$true] %s245
          %251 = dma.hbm_to_vmem [thread:$0]  %s244, 128, %s246, %s235, 32, 32, 2
        $region36: #{tpu_custom_call.1} parent=27 // pred_fallthru
          _
      $region28: #{tpu_custom_call.1} parent=5 // pred_fallthru
        _
      %p252 = scmp.le.s32.totalorder 1, %s21
      %p253 = scmp.lt.s32.totalorder %s21, 3
      %p254 = pnand %p252, %p253
      %p255 = pneg %p254
      // Predicated region
      $region37: #{tpu_custom_call.1} parent=5 // pred_check
        _
      $region38: #{tpu_custom_call.1} parent=5 // pred_check_branch
        %257 = sbr.rel (%p254) target = $region40
      $region39: #{tpu_custom_call.1} parent=5 // pred_region
        %s258 = ssub.s32 %s21, 1
        %s259 = sand.u32 %s34, 1
        %s260 = scalar_lea.sflag [#allocation4], %s259
        %s261 = sand.u32 %s34, 1
        %s262 = smul.addr %s261, 4
        %s263 = scalar_lea.vmem [#allocation3], %s262
        // Predicated region
        $region41: #{tpu_custom_call.1} parent=39 // pred_check
          %p264 = pneg %p47
        $region42: #{tpu_custom_call.1} parent=39 // pred_check_branch
          %266 = sbr.rel (%p264) target = $region44
        $region43: #{tpu_custom_call.1} parent=39 // pred_region
          %267 = dma.done %s260, 64
        $region44: #{tpu_custom_call.1} parent=39 // pred_fallthru
          _
        %s268 = sand.u32 %s26, 1
        %s269 = scalar_lea.sflag [#allocation7], %s268
        %s270 = sand.u32 %s60, 1
        %s271 = smul.addr %s270, 8
        %s272 = scalar_lea.vmem [#allocation6], %s271
        // Predicated region
        $region45: #{tpu_custom_call.1} parent=39 // pred_check
          %p273 = pneg %p73
        $region46: #{tpu_custom_call.1} parent=39 // pred_check_branch
          %275 = sbr.rel (%p273) target = $region48
        $region47: #{tpu_custom_call.1} parent=39 // pred_region
          %276 = dma.done %s269, 128
        $region48: #{tpu_custom_call.1} parent=39 // pred_fallthru
          _
        // Predicated region
        $region49: #{tpu_custom_call.1} parent=39 // pred_check
          %p277 = pneg %p94
        $region50: #{tpu_custom_call.1} parent=39 // pred_check_branch
          %279 = sbr.rel (%p277) target = $region52
        $region51: #{tpu_custom_call.1} parent=39 // pred_region
          %280 = dma.done [#allocation7], 256
        $region52: #{tpu_custom_call.1} parent=39 // pred_fallthru
          _
        // Predicated region
        $region53: #{tpu_custom_call.1} parent=39 // pred_check
          %p281 = pneg %p115
        $region54: #{tpu_custom_call.1} parent=39 // pred_check_branch
          %283 = sbr.rel (%p281) target = $region56
        $region55: #{tpu_custom_call.1} parent=39 // pred_region
          %284 = dma.done [#allocation10], 1024
        $region56: #{tpu_custom_call.1} parent=39 // pred_fallthru
          _
        %s285 = sand.u32 %s34, 1
        %s286 = scalar_lea.sflag [#allocation4], %s285
        %s287 = sand.u32 %s34, 1
        %s288 = smul.addr %s287, 4
        %s289 = scalar_lea.vmem [#allocation3], %s288
        %p290 = pneg %p47
        %p291 = pneg %p44
        %s292 = sand.u32 %s26, 1
        %s293 = scalar_lea.sflag [#allocation7], %s292
        %s294 = sand.u32 %s60, 1
        %s295 = smul.addr %s294, 8
        %s296 = scalar_lea.vmem [#allocation6], %s295
        %p297 = pneg %p73
        %p298 = pneg %p70
        %p299 = pneg %p94
        %p300 = pneg %p91
        %p301 = pneg %p115
        %p302 = pneg %p112
        %p303 = pneg %p136
        %p304 = pneg %p133
        %p305 = pneg %p162
        %p306 = pneg %p159
        %s307 = sand.u32 %s149, 1
        %s308 = scalar_lea.sflag [#allocation5], %s307
        %s309 = sand.u32 %s149, 1
        %s310 = smul.addr %s309, 8
        %s311 = scalar_lea.vmem [#allocation11], %s310
        %313 = vst [vmem:[#allocation2] sm:$0x3f] 0.0
        %s314 = scalar_lea.vmem [#allocation2], 40
        %315 = vst [vmem:[%s314] sm:$0x3f] 0.0
        %316 = vst [vmem:[#allocation2] sm:$0x1] 0.0
        %317 = vst [vmem:[#allocation2 + $0x8] sm:$0x1] 0.0
        %318 = vst [vmem:[#allocation2 + $0x10] sm:$0x1] 0.0
        %319 = vst [vmem:[#allocation2 + $0x18] sm:$0x1] 0.0
        %320 = vst [vmem:[#allocation2 + $0x20] sm:$0x1] 0.0
        %321 = vst [vmem:[#allocation2 + $0x28] sm:$0x1] 0.0
        %322 = vst [vmem:[#allocation2 + $0x5] sm:$0x1] 0.0
        %323 = vst [vmem:[#allocation2 + $0xd] sm:$0x1] 0.0
        %324 = vst [vmem:[#allocation2 + $0x15] sm:$0x1] 0.0
        %325 = vst [vmem:[#allocation2 + $0x1d] sm:$0x1] 0.0
        %326 = vst [vmem:[#allocation2 + $0x25] sm:$0x1] 0.0
        %327 = vst [vmem:[#allocation2 + $0x2d] sm:$0x1] 0.0
        %v328 = vld [vmem:[%s263] sm:$0x3]
        %v329 = vld [vmem:[%s263 + $0x2] sm:$0x3]
        %v330 = vunpack.c.l.bf16 %v328
        %v331 = vunpack.c.l.bf16 %v329
        %v332 = vld [vmem:[%s272] sm:$0x3]
        %v333 = vld [vmem:[%s272 + $0x2] sm:$0x3]
        %v334 = vld [vmem:[%s272 + $0x4] sm:$0x3]
        %v335 = vld [vmem:[%s272 + $0x6] sm:$0x3]
        %v336 = vunpack.c.l.bf16 %v332
        %v337 = vunpack.c.l.bf16 %v333
        %v338 = vunpack.c.l.bf16 %v334
        %v339 = vunpack.c.l.bf16 %v335
        %v340 = vadd.f32 %v330, %v336
        %v341 = vadd.f32 %v330, %v337
        %v342 = vadd.f32 %v331, %v338
        %v343 = vadd.f32 %v331, %v339
        %s344 = scalar_lea.vmem [#allocation2], 8
        %345 = vst [vmem:[%s344 + $0x1] sm:$0xf] %v340
        %346 = vst [vmem:[%s344 + $0x9] sm:$0xf] %v341
        %347 = vst [vmem:[%s344 + $0x11] sm:$0xf] %v342
        %348 = vst [vmem:[%s344 + $0x19] sm:$0xf] %v343
        %v349 = vld [vmem:[#allocation8] sm:$0xff]
        %v350 = vld [vmem:[#allocation8 + $0x8] sm:$0x1]
        %v351 = vld [vmem:[#allocation9] sm:$0xf]
        %v352 = vld [vmem:[#allocation9 + $0x4] sm:$0xf]
        %v353 = vld [vmem:[#allocation9 + $0x8] sm:$0xf]
        %v354 = vld [vmem:[#allocation9 + $0xc] sm:$0xf]
        %v355 = vld [vmem:[#allocation9 + $0x10] sm:$0xf]
        %v356 = vld [vmem:[#allocation9 + $0x14] sm:$0xf]
        %v357 = vld [vmem:[#allocation9 + $0x18] sm:$0xf]
        %v358 = vld [vmem:[#allocation9 + $0x1c] sm:$0xf]
        %v359 = vld [vmem:[#allocation9 + $0x20] sm:$0xf]
        %v360 = vld [vmem:[#allocation9 + $0x24] sm:$0xf]
        %v361 = vld [vmem:[#allocation9 + $0x28] sm:$0xf]
        %v362 = vld [vmem:[#allocation9 + $0x2c] sm:$0xf]
        %v363 = vld [vmem:[#allocation9 + $0x30] sm:$0xf]
        %v364 = vld [vmem:[#allocation9 + $0x34] sm:$0xf]
        %v365 = vld [vmem:[#allocation9 + $0x38] sm:$0xf]
        %v366 = vld [vmem:[#allocation9 + $0x3c] sm:$0xf]
        %v367 = vld [vmem:[%s4] sm:$0x1]
        %v368 = vld [vmem:[#allocation2] sm:$0xf]
        %v369 = vld [vmem:[#allocation2 + $0x8] sm:$0xf]
        %v370 = vld [vmem:[#allocation2 + $0x10] sm:$0xf]
        %v371 = vld [vmem:[#allocation2 + $0x18] sm:$0xf]
        %v372 = vlaneseq
        %v373 = vshrl.u32 %v372, 7
        %v374 = vsub.s32 0, %v373
        %v375 = vrot.slane %v349, %v374
        %v376 = vmul.f32 %v368, %v375
        %v377 = vmul.f32 %v369, %v375
        %v378 = vmul.f32 %v370, %v375
        %v379 = vmul.f32 %v371, %v375
        %v380 = vld [vmem:[#allocation2 + $0x1] sm:$0xf]
        %v381 = vld [vmem:[#allocation2 + $0x9] sm:$0xf]
        %v382 = vld [vmem:[#allocation2 + $0x11] sm:$0xf]
        %v383 = vld [vmem:[#allocation2 + $0x19] sm:$0xf]
        %v384 = vlaneseq
        %v385 = vshrl.u32 %v384, 7
        %v386 = vsub.s32 1, %v385
        %v387 = vrot.slane %v349, %v386
        %v388 = vmul.f32 %v380, %v387
        %v389 = vmul.f32 %v381, %v387
        %v390 = vmul.f32 %v382, %v387
        %v391 = vmul.f32 %v383, %v387
        %v392 = vadd.f32 %v376, %v388
        %v393 = vadd.f32 %v377, %v389
        %v394 = vadd.f32 %v378, %v390
        %v395 = vadd.f32 %v379, %v391
        %v396 = vld [vmem:[#allocation2 + $0x2] sm:$0xf]
        %v397 = vld [vmem:[#allocation2 + $0xa] sm:$0xf]
        %v398 = vld [vmem:[#allocation2 + $0x12] sm:$0xf]
        %v399 = vld [vmem:[#allocation2 + $0x1a] sm:$0xf]
        %v400 = vlaneseq
        %v401 = vshrl.u32 %v400, 7
        %v402 = vsub.s32 2, %v401
        %v403 = vrot.slane %v349, %v402
        %v404 = vmul.f32 %v396, %v403
        %v405 = vmul.f32 %v397, %v403
        %v406 = vmul.f32 %v398, %v403
        %v407 = vmul.f32 %v399, %v403
        %v408 = vadd.f32 %v392, %v404
        %v409 = vadd.f32 %v393, %v405
        %v410 = vadd.f32 %v394, %v406
        %v411 = vadd.f32 %v395, %v407
        %v412 = vld [vmem:[%s344] sm:$0xf]
        %v413 = vld [vmem:[%s344 + $0x8] sm:$0xf]
        %v414 = vld [vmem:[%s344 + $0x10] sm:$0xf]
        %v415 = vld [vmem:[%s344 + $0x18] sm:$0xf]
        %v416 = vlaneseq
        %v417 = vshrl.u32 %v416, 7
        %v418 = vsub.s32 3, %v417
        %v419 = vrot.slane %v349, %v418
        %v420 = vmul.f32 %v412, %v419
        %v421 = vmul.f32 %v413, %v419
        %v422 = vmul.f32 %v414, %v419
        %v423 = vmul.f32 %v415, %v419
        %v424 = vadd.f32 %v408, %v420
        %v425 = vadd.f32 %v409, %v421
        %v426 = vadd.f32 %v410, %v422
        %v427 = vadd.f32 %v411, %v423
        %v428 = vld [vmem:[%s344 + $0x1] sm:$0xf]
        %v429 = vld [vmem:[%s344 + $0x9] sm:$0xf]
        %v430 = vld [vmem:[%s344 + $0x11] sm:$0xf]
        %v431 = vld [vmem:[%s344 + $0x19] sm:$0xf]
        %v432 = vlaneseq
        %v433 = vshrl.u32 %v432, 7
        %v434 = vsub.s32 4, %v433
        %v435 = vrot.slane %v349, %v434
        %v436 = vmul.f32 %v428, %v435
        %v437 = vmul.f32 %v429, %v435
        %v438 = vmul.f32 %v430, %v435
        %v439 = vmul.f32 %v431, %v435
        %v440 = vadd.f32 %v424, %v436
        %v441 = vadd.f32 %v425, %v437
        %v442 = vadd.f32 %v426, %v438
        %v443 = vadd.f32 %v427, %v439
        %v444 = vld [vmem:[%s344 + $0x2] sm:$0xf]
        %v445 = vld [vmem:[%s344 + $0xa] sm:$0xf]
        %v446 = vld [vmem:[%s344 + $0x12] sm:$0xf]
        %v447 = vld [vmem:[%s344 + $0x1a] sm:$0xf]
        %v448 = vlaneseq
        %v449 = vshrl.u32 %v448, 7
        %v450 = vsub.s32 5, %v449
        %v451 = vrot.slane %v349, %v450
        %v452 = vmul.f32 %v444, %v451
        %v453 = vmul.f32 %v445, %v451
        %v454 = vmul.f32 %v446, %v451
        %v455 = vmul.f32 %v447, %v451
        %v456 = vadd.f32 %v440, %v452
        %v457 = vadd.f32 %v441, %v453
        %v458 = vadd.f32 %v442, %v454
        %v459 = vadd.f32 %v443, %v455
        %s460 = scalar_lea.vmem [#allocation2], 16
        %v461 = vld [vmem:[%s460] sm:$0xf]
        %v462 = vld [vmem:[%s460 + $0x8] sm:$0xf]
        %v463 = vld [vmem:[%s460 + $0x10] sm:$0xf]
        %v464 = vld [vmem:[%s460 + $0x18] sm:$0xf]
        %v465 = vlaneseq
        %v466 = vshrl.u32 %v465, 7
        %v467 = vsub.s32 6, %v466
        %v468 = vrot.slane %v349, %v467
        %v469 = vmul.f32 %v461, %v468
        %v470 = vmul.f32 %v462, %v468
        %v471 = vmul.f32 %v463, %v468
        %v472 = vmul.f32 %v464, %v468
        %v473 = vadd.f32 %v456, %v469
        %v474 = vadd.f32 %v457, %v470
        %v475 = vadd.f32 %v458, %v471
        %v476 = vadd.f32 %v459, %v472
        %v477 = vld [vmem:[%s460 + $0x1] sm:$0xf]
        %v478 = vld [vmem:[%s460 + $0x9] sm:$0xf]
        %v479 = vld [vmem:[%s460 + $0x11] sm:$0xf]
        %v480 = vld [vmem:[%s460 + $0x19] sm:$0xf]
        %v481 = vlaneseq
        %v482 = vshrl.u32 %v481, 7
        %v483 = vsub.s32 7, %v482
        %v484 = vrot.slane %v349, %v483
        %v485 = vmul.f32 %v477, %v484
        %v486 = vmul.f32 %v478, %v484
        %v487 = vmul.f32 %v479, %v484
        %v488 = vmul.f32 %v480, %v484
        %v489 = vadd.f32 %v473, %v485
        %v490 = vadd.f32 %v474, %v486
        %v491 = vadd.f32 %v475, %v487
        %v492 = vadd.f32 %v476, %v488
        %v493 = vld [vmem:[%s460 + $0x2] sm:$0xf]
        %v494 = vld [vmem:[%s460 + $0xa] sm:$0xf]
        %v495 = vld [vmem:[%s460 + $0x12] sm:$0xf]
        %v496 = vld [vmem:[%s460 + $0x1a] sm:$0xf]
        %v497 = vlaneseq
        %v498 = vshrl.u32 %v497, 7
        %v499 = vsub.s32 0, %v498
        %v500 = vrot.slane %v350, %v499
        %v501 = vmul.f32 %v493, %v500
        %v502 = vmul.f32 %v494, %v500
        %v503 = vmul.f32 %v495, %v500
        %v504 = vmul.f32 %v496, %v500
        %v505 = vadd.f32 %v489, %v501
        %v506 = vadd.f32 %v490, %v502
        %v507 = vadd.f32 %v491, %v503
        %v508 = vadd.f32 %v492, %v504
        %v513 = vcombine.low %v505, %v506
        %v514 = vcombine.low %v507, %v508
        %v517 = vpack.c.bf16 %v514, %v513
        %v519 = vlaneseq
        %v520 = vshrl.u32 %v519, 7
        %v521 = vsub.s32 0, %v520
        %v522 = vrot.slane %v367, %v521
        %v540 = vunpack.c.l.b16 %v351
        %v541 = vunpack.c.l.b16 %v352
        %v542 = vunpack.c.l.b16 %v353
        %v543 = vunpack.c.l.b16 %v354
        %v544 = vunpack.c.l.b16 %v355
        %v545 = vunpack.c.l.b16 %v356
        %v546 = vunpack.c.l.b16 %v357
        %v547 = vunpack.c.l.b16 %v358
        %v548 = vunpack.c.l.b16 %v359
        %v549 = vunpack.c.l.b16 %v360
        %v550 = vunpack.c.l.b16 %v361
        %v551 = vunpack.c.l.b16 %v362
        %v552 = vunpack.c.l.b16 %v363
        %v553 = vunpack.c.l.b16 %v364
        %v554 = vunpack.c.l.b16 %v365
        %v555 = vunpack.c.l.b16 %v366
        %v556 = vpack.c.b16 %v541, %v540
        %v557 = vpack.c.b16 %v543, %v542
        %v558 = vpack.c.b16 %v545, %v544
        %v559 = vpack.c.b16 %v547, %v546
        %v560 = vpack.c.b16 %v549, %v548
        %v561 = vpack.c.b16 %v551, %v550
        %v562 = vpack.c.b16 %v553, %v552
        %v563 = vpack.c.b16 %v555, %v554
        %572 = vmatprep.subr.bf16.mxu0 0
        %573 = vmatpush1.bf16.msra.mxu0 %v563
        %574 = vmatprep.subr.bf16.mxu0 0
        %575 = vmatpush1.bf16.msra.mxu0 %v562
        %576 = vmatprep.subr.bf16.mxu0 0
        %577 = vmatpush1.bf16.msra.mxu0 %v561
        %578 = vmatprep.subr.bf16.mxu0 0
        %579 = vmatpush1.bf16.msra.mxu0 %v560
        %580 = vmatprep.subr.bf16.mxu0 0
        %581 = vmatpush1.bf16.msra.mxu0 %v559
        %582 = vmatprep.subr.bf16.mxu0 0
        %583 = vmatpush1.bf16.msra.mxu0 %v558
        %584 = vmatprep.subr.bf16.mxu0 0
        %585 = vmatpush1.bf16.msra.mxu0 %v557
        %586 = vmatprep.subr.bf16.mxu0 0
        %587 = vmatpush1.bf16.msra.mxu0 %v556
        %588 = vmatprep.subr.bf16.mxu0 0
        %589 = vmatpush2.bf16.msra.mxu0 0
        %590 = vmatprep.subr.bf16.mxu0 0
        %591 = vmatpush2.bf16.msra.mxu0 0
        %592 = vmatprep.subr.bf16.mxu0 0
        %593 = vmatpush2.bf16.msra.mxu0 0
        %594 = vmatprep.subr.bf16.mxu0 0
        %595 = vmatpush2.bf16.msra.mxu0 0
        %596 = vmatprep.subr.bf16.mxu0 0
        %597 = vmatpush2.bf16.msra.mxu0 0
        %598 = vmatprep.subr.bf16.mxu0 0
        %599 = vmatpush2.bf16.msra.mxu0 0
        %600 = vmatprep.subr.bf16.mxu0 0
        %601 = vmatpush2.bf16.msra.mxu0 0
        %602 = vmatprep.subr.bf16.mxu0 0
        %603 = vmatpush2.bf16.msra.mxu0 0
        %604 = vmatprep.mubr.bf16.mxu0 0
        %605 = vmatmul.mubr.bf16.gmra.mxu0 %v517
        %v606 = vpop.f32.mrf.mxu0
        %v607 = vadd.f32 %v522, %v606
        %v608 = vpop.f32.mrf.mxu0
        %v609 = vpop.f32.mrf.mxu0
        %v610 = vadd.f32 %v522, %v609
        %v611 = vpop.f32.mrf.mxu0
        %612 = vdwg.mxu0
        %v613 = vmax.f32 %v607, 0.0
        %v614 = vmax.f32 %v610, 0.0
        %v617 = vcombine.high %v613, %v613
        %v618 = vcombine.high %v614, %v614
        %v621 = vpack.c.bf16 %v613, %v613
        %v622 = vpack.c.bf16 %v617, %v617
        %v623 = vpack.c.bf16 %v614, %v614
        %v624 = vpack.c.bf16 %v618, %v618
        %625 = vst [vmem:[%s311] sm:$0x3] %v621
        %626 = vst [vmem:[%s311 + $0x2] sm:$0x3] %v622
        %627 = vst [vmem:[%s311 + $0x4] sm:$0x3] %v623
        %628 = vst [vmem:[%s311 + $0x6] sm:$0x3] %v624
        %s629 = sand.u32 %s149, 1
        %s630 = scalar_lea.sflag [#allocation5], %s629
        %s631 = sand.u32 %s149, 1
        %s632 = smul.addr %s631, 8
        %s633 = scalar_lea.vmem [#allocation11], %s632
        // Predicated region
        $region57: #{tpu_custom_call.1} parent=39 // pred_check
          %p634 = pneg %p159
        $region58: #{tpu_custom_call.1} parent=39 // pred_check_branch
          %636 = sbr.rel (%p634) target = $region60
        $region59: #{tpu_custom_call.1} parent=39 // pred_region
          %s638 = ssub.s32 128, 128
          %639 = vsyncadd %s630, %s638
          %s640 = smul.addr %s26, 4
          %s641 = smul.addr %s640, 32
          %s642 = scalar_lea.hbm %s5, %s641
          %s643 = sshll.u32 %s633, 4
          %s644 = int_to_ptr.vmem [resolvable:$true] %s643
          %649 = dma.vmem_to_hbm [thread:$0]  %s644, 128, %s642, %s630, 32, 32, 2
        $region60: #{tpu_custom_call.1} parent=39 // pred_fallthru
          _
      $region40: #{tpu_custom_call.1} parent=5 // pred_fallthru
        _
      %p650 = scmp.le.s32.totalorder 2, %s21
      // Predicated region
      $region61: #{tpu_custom_call.1} parent=5 // pred_check
        %p651 = pneg %p650
      $region62: #{tpu_custom_call.1} parent=5 // pred_check_branch
        %653 = sbr.rel (%p651) target = $region64
      $region63: #{tpu_custom_call.1} parent=5 // pred_region
        %s654 = ssub.s32 %s21, 2
        // Predicated region
        $region65: #{tpu_custom_call.1} parent=63 // pred_check
          %p655 = pneg %p165
        $region66: #{tpu_custom_call.1} parent=63 // pred_check_branch
          %657 = sbr.rel (%p655) target = $region68
        $region67: #{tpu_custom_call.1} parent=63 // pred_region
          %s658 = sand.u32 %s150, 1
          %s659 = scalar_lea.sflag [#allocation5], %s658
          %s660 = sand.u32 %s150, 1
          %s661 = smul.addr %s660, 8
          %s662 = scalar_lea.vmem [#allocation11], %s661
          %663 = dma.done %s659, 128
        $region68: #{tpu_custom_call.1} parent=63 // pred_fallthru
          _
      $region64: #{tpu_custom_call.1} parent=5 // pred_fallthru
        _
    $region6: #{tpu_custom_call.1} parent=1 // loop_footer
      %s25 = sadd.s32 1, %s21
    $region7: #{tpu_custom_call.1} parent=1 // loop_footer_branch
      %20 = sbr.rel target = $region3
    $region8: #{tpu_custom_call.1} parent=1 // loop_exit
      _
    %664 = vsyncpa [#allocation4], 1
    %s665 = scalar_lea.sflag [#allocation4], 1
    %666 = vsyncpa %s665, 1
    %667 = vsyncpa [#allocation7], 1
    %s668 = scalar_lea.sflag [#allocation7], 1
    %669 = vsyncpa %s668, 1
    %670 = vsyncpa [#allocation10], 1
    %671 = vsyncpa [#allocation5], 1
    %s672 = scalar_lea.sflag [#allocation5], 1
    %673 = vsyncpa %s672, 1

</llo_original>
